<compile_context>
chip_gen: v6e
topology: v6e:2x2x1
jax: 0.10.0
libtpu: 0.0.40
codegen_flags: <defaults>
</compile_context>

<pallas_src>
import math

import jax
import jax.numpy as jnp
from jax import lax
from jax.experimental import pallas as pl
from jax.experimental.pallas import tpu as pltpu

_INV_SQRT2 = 0.7071067811865476  # 1/sqrt(2); multiply instead of divide.


def _ffn_partial(x_ref, w1_ref, b1_ref, w2_ref):
    """fc1 + exact GELU on the current (tm, tn) chunk, then the fc2 partial.

    x_ref : (tm, H)   activation row tile
    w1_ref: (H, tn)   fc1 weight chunk, pre-transposed (canonical K-major RHS)
    b1_ref: (1, tn)   fc1 bias chunk
    w2_ref: (tn, H)   fc2 weight chunk, pre-transposed
    returns (tm, H) f32 partial product of fc2.
    """
    h = jnp.dot(x_ref[...], w1_ref[...], preferred_element_type=jnp.float32)
    h = h + b1_ref[...].astype(jnp.float32)
    # Exact (erf-based) GELU, matching the PyTorch reference, in f32.
    h = h * 0.5 * (1.0 + lax.erf(h * _INV_SQRT2))
    return jnp.dot(h.astype(w2_ref.dtype), w2_ref[...],
                   preferred_element_type=jnp.float32)


def _ffn_kernel_f32out(x_ref, w1_ref, b1_ref, w2_ref, b2_ref, o_ref):
    # f32 output: accumulate directly into the resident output block.
    k = pl.program_id(1)

    @pl.when(k == 0)
    def _():
        o_ref[...] = jnp.zeros_like(o_ref)

    o_ref[...] += _ffn_partial(x_ref, w1_ref, b1_ref, w2_ref)

    @pl.when(k == pl.num_programs(1) - 1)
    def _():
        o_ref[...] += b2_ref[...].astype(o_ref.dtype)


def _ffn_kernel_acc(x_ref, w1_ref, b1_ref, w2_ref, b2_ref, o_ref, acc_ref):
    # Narrow output dtype: accumulate in an f32 scratch, cast on the last step.
    k = pl.program_id(1)

    @pl.when(k == 0)
    def _():
        acc_ref[...] = jnp.zeros_like(acc_ref)

    acc_ref[...] += _ffn_partial(x_ref, w1_ref, b1_ref, w2_ref)

    @pl.when(k == pl.num_programs(1) - 1)
    def _():
        o_ref[...] = (acc_ref[...]
                      + b2_ref[...].astype(jnp.float32)).astype(o_ref.dtype)


def _vmem_capacity_bytes():
    try:
        return int(pltpu.get_tpu_info().vmem_capacity_bytes)
    except Exception:
        return 64 << 20  # conservative fallback (v7x per-core VMEM)


def _pick_tiles(M, H, H4, x_item, w_item, o_item, use_acc, budget):
    """Largest (tm, tn) whose double-buffered working set fits the VMEM budget."""
    m_ceil = -(-M // 8) * 8
    tn_cands = [t for t in (1024, 512, 256, 128) if H4 % t == 0] or [H4]
    tm_cands = [t for t in (1024, 512, 256, 128, 64, 32, 16, 8) if t <= m_ceil] \
        or [m_ceil]

    def working_set(tm, tn):
        x_b = tm * H * x_item
        o_b = tm * H * o_item
        w1_b = H * tn * w_item
        w2_b = tn * H * w_item
        bias_b = (tn + H) * 4
        acc_b = tm * H * 4 if use_acc else 0
        return 2 * (x_b + o_b + w1_b + w2_b + bias_b) + acc_b

    for tm in tm_cands:            # prefer big row tiles (weight reuse)
        for tn in tn_cands:        # then big K chunks (fewer acc RMW passes)
            if working_set(tm, tn) <= budget:
                # Megacore: keep >=2 row tiles when the problem allows (v7x).
                if -(-M // tm) < 2 and tm >= 16:
                    tm //= 2
                return tm, tn
    return tm_cands[-1], tn_cands[-1]


def position_wise_ffn(x, w1, b1, w2, b2, *, tm=None, tn=None):
    """x: [B, S, H]; w1: [4H, H]; b1: [4H]; w2: [H, 4H]; b2: [H] (PyTorch layouts).

    For production, cast params/activations to bf16 before calling; the kernel
    keeps the GELU epilogue and fc2 accumulation in f32 regardless of dtype.
    """
    B, S, H = x.shape
    H4, H_in = w1.shape
    assert H_in == H and w2.shape == (H, H4) and b1.shape == (H4,) and b2.shape == (H,)

    M = B * S
    out_dtype = x.dtype
    use_acc = out_dtype != jnp.float32

    x_item = jnp.dtype(x.dtype).itemsize
    w_item = jnp.dtype(w1.dtype).itemsize
    o_item = jnp.dtype(out_dtype).itemsize

    vmem_cap = _vmem_capacity_bytes()
    vmem_limit = int(vmem_cap * 0.8)        # leave headroom for compiler scratch
    tile_budget = int(vmem_limit * 0.8)

    auto_tm, auto_tn = _pick_tiles(M, H, H4, x_item, w_item, o_item,
                                   use_acc, tile_budget)
    tm = auto_tm if tm is None else tm
    tn = auto_tn if tn is None else tn
    assert H4 % tn == 0, "tn must divide the 4H expansion dimension"

    M_pad = -(-M // tm) * tm
    n_row = M_pad // tm
    n_k = H4 // tn

    # One-time layout fix in the wrapper: canonical K-major RHS tiles for the
    # MXU so Mosaic never transposes weight chunks inside the kernel.
    w1t = jnp.transpose(w1)                 # (H, 4H)
    w2t = jnp.transpose(w2)                 # (4H, H)
    b1_2 = b1.reshape(1, H4)
    b2_2 = b2.reshape(1, H)

    x2 = x.reshape(M, H)
    if M_pad != M:
        # TODO(synk): replace this pad with a masked store for the ragged tail tile.
        x2 = jnp.pad(x2, ((0, M_pad - M), (0, 0)))

    # Weights are re-streamed from HBM once per row tile; count that honestly.
    bytes_accessed = (M_pad * H * x_item                    # activations in
                      + M_pad * H * o_item                  # activations out
                      + n_row * (2 * H * H4) * w_item       # w1 + w2 per row tile
                      + (H4 + H) * 4)                       # biases
    cost = pl.CostEstimate(
        flops=2 * 2 * M_pad * H * H4,       # two matmuls
        transcendentals=M_pad * H4,         # erf per expansion element
        bytes_accessed=bytes_accessed)

    in_specs = [
        pl.BlockSpec((tm, H), lambda i, k: (i, 0)),    # x row tile
        pl.BlockSpec((H, tn), lambda i, k: (0, k)),    # fc1 weight chunk (H, tn)
        pl.BlockSpec((1, tn), lambda i, k: (0, k)),    # fc1 bias chunk
        pl.BlockSpec((tn, H), lambda i, k: (k, 0)),    # fc2 weight chunk (tn, H)
        pl.BlockSpec((1, H), lambda i, k: (0, 0)),     # fc2 bias
    ]
    out_spec = pl.BlockSpec((tm, H), lambda i, k: (i, 0))

    kernel = _ffn_kernel_acc if use_acc else _ffn_kernel_f32out
    scratch = [pltpu.VMEM((tm, H), jnp.float32)] if use_acc else []

    out = pl.pallas_call(
        kernel,
        out_shape=jax.ShapeDtypeStruct((M_pad, H), out_dtype),
        grid_spec=pltpu.PrefetchScalarGridSpec(
            num_scalar_prefetch=0,
            grid=(n_row, n_k),              # reduction (K) axis innermost
            in_specs=in_specs,
            out_specs=out_spec,
            scratch_shapes=scratch),
        compiler_params=pltpu.CompilerParams(
            dimension_semantics=("parallel", "arbitrary"),
            vmem_limit_bytes=vmem_limit),
        cost_estimate=cost,
    )(x2, w1t, b1_2, w2t, b2_2)

    if M_pad != M:
        out = out[:M]
    return out.reshape(B, S, H)


def _reference_ffn(x, w1, b1, w2, b2):
    h = jnp.einsum("bsh,fh->bsf", x, w1) + b1
    h = h * 0.5 * (1.0 + lax.erf(h * _INV_SQRT2))
    return jnp.einsum("bsf,hf->bsh", h, w2) + b2


if __name__ == "__main__":
    key = jax.random.PRNGKey(0)
    batch, seq, hidden = 2, 8, 32
    hidden4 = hidden * 4

    kx, k1, k2, k3, k4 = jax.random.split(key, 5)
    x = jax.random.normal(kx, (batch, seq, hidden), dtype=jnp.float32)

    # Deterministic init mimicking nn.Linear's uniform(-1/sqrt(fan_in), 1/sqrt(fan_in)).
    bound1 = 1.0 / math.sqrt(hidden)
    w1 = jax.random.uniform(k1, (hidden4, hidden), jnp.float32, -bound1, bound1)
    b1 = jax.random.uniform(k2, (hidden4,), jnp.float32, -bound1, bound1)
    bound2 = 1.0 / math.sqrt(hidden4)
    w2 = jax.random.uniform(k3, (hidden, hidden4), jnp.float32, -bound2, bound2)
    b2 = jax.random.uniform(k4, (hidden,), jnp.float32, -bound2, bound2)

    out = position_wise_ffn(x, w1, b1, w2, b2)
    out = jax.block_until_ready(out)

    ref = _reference_ffn(x, w1, b1, w2, b2)
    assert out.shape == (batch, seq, hidden)
    assert jnp.allclose(out, ref, atol=1e-5, rtol=1e-5)

    print("KERNEL_OK")
</pallas_src>

<mosaic_0001>
module attributes {stable_mosaic.version = 11 : i64} {
  func.func @_ffn_kernel_f32out(%arg0: i32, %arg1: i32, %arg2: memref<8x32xf32, #tpu.memory_space<vmem>>, %arg3: memref<32x128xf32, #tpu.memory_space<vmem>>, %arg4: memref<1x128xf32, #tpu.memory_space<vmem>>, %arg5: memref<128x32xf32, #tpu.memory_space<vmem>>, %arg6: memref<1x32xf32, #tpu.memory_space<vmem>>, %arg7: memref<8x32xf32, #tpu.memory_space<vmem>>) attributes {dimension_semantics = [#tpu.dimension_semantics<parallel>, #tpu.dimension_semantics<arbitrary>], iteration_bounds = array<i64: 2, 1>, scalar_prefetch = 0 : i64, scratch_operands = 0 : i64, tpu.core_type = #tpu.core_type<tc>, window_params = [{transform_indices = @transform_0, window_bounds = array<i64: 8, 32>}, {transform_indices = @transform_1, window_bounds = array<i64: 32, 128>}, {transform_indices = @transform_2, window_bounds = array<i64: 1, 128>}, {transform_indices = @transform_3, window_bounds = array<i64: 128, 32>}, {pipeline_mode = #tpu.pipeline_mode<synchronous>, transform_indices = @transform_4, window_bounds = array<i64: 1, 32>}, {transform_indices = @transform_5, window_bounds = array<i64: 8, 32>}]} {
    %c0_i32 = arith.constant 0 : i32
    %0 = arith.cmpi eq, %arg1, %c0_i32 : i32
    %1 = arith.extui %0 : i1 to i32
    %c0_i32_0 = arith.constant 0 : i32
    %2 = arith.cmpi ne, %1, %c0_i32_0 : i32
    scf.if %2 {
      %cst_18 = arith.constant 0.000000e+00 : f32
      %25 = vector.broadcast %cst_18 : f32 to vector<8x32xf32>
      %c0_19 = arith.constant 0 : index
      %c0_20 = arith.constant 0 : index
      %26 = vector.load %arg7[%c0_19, %c0_20] : memref<8x32xf32, #tpu.memory_space<vmem>>, vector<8x32xf32>
      tpu.vector_store %arg7[%c0_19, %c0_20], %25 {strides = array<i32>} : memref<8x32xf32, #tpu.memory_space<vmem>>, vector<8x32xf32>,
    } else {
    }
    %c0 = arith.constant 0 : index
    %c0_1 = arith.constant 0 : index
    %3 = vector.load %arg7[%c0, %c0_1] : memref<8x32xf32, #tpu.memory_space<vmem>>, vector<8x32xf32>
    %c0_2 = arith.constant 0 : index
    %c0_3 = arith.constant 0 : index
    %4 = vector.load %arg2[%c0_2, %c0_3] : memref<8x32xf32, #tpu.memory_space<vmem>>, vector<8x32xf32>
    %c0_4 = arith.constant 0 : index
    %c0_5 = arith.constant 0 : index
    %5 = vector.load %arg3[%c0_4, %c0_5] : memref<32x128xf32, #tpu.memory_space<vmem>>, vector<32x128xf32>
    %cst = arith.constant dense<0.000000e+00> : vector<8x128xf32>
    %6 = tpu.matmul %4, %5, %cst {dimension_numbers = #tpu.dot_dimension_numbers<[1], [0], [0], [1], [0, 0, 1, 1], [], []>} : vector<8x32xf32>, vector<32x128xf32>, vector<8x128xf32> -> vector<8x128xf32>
    %c0_6 = arith.constant 0 : index
    %c0_7 = arith.constant 0 : index
    %7 = vector.load %arg4[%c0_6, %c0_7] : memref<1x128xf32, #tpu.memory_space<vmem>>, vector<1x128xf32>
    %8 = vector.broadcast %7 : vector<1x128xf32> to vector<8x128xf32>
    %9 = arith.addf %6, %8 : vector<8x128xf32>
    %cst_8 = arith.constant 5.000000e-01 : f32
    %10 = vector.broadcast %cst_8 : f32 to vector<8x128xf32>
    %11 = arith.mulf %9, %10 : vector<8x128xf32>
    %cst_9 = arith.constant 0.707106769 : f32
    %12 = vector.broadcast %cst_9 : f32 to vector<8x128xf32>
    %13 = arith.mulf %9, %12 : vector<8x128xf32>
    %14 = math.erf %13 : vector<8x128xf32>
    %cst_10 = arith.constant 1.000000e+00 : f32
    %15 = vector.broadcast %cst_10 : f32 to vector<8x128xf32>
    %16 = arith.addf %15, %14 : vector<8x128xf32>
    %17 = arith.mulf %11, %16 : vector<8x128xf32>
    %c0_11 = arith.constant 0 : index
    %c0_12 = arith.constant 0 : index
    %18 = vector.load %arg5[%c0_11, %c0_12] : memref<128x32xf32, #tpu.memory_space<vmem>>, vector<128x32xf32>
    %cst_13 = arith.constant dense<0.000000e+00> : vector<8x32xf32>
    %19 = tpu.matmul %17, %18, %cst_13 {dimension_numbers = #tpu.dot_dimension_numbers<[1], [0], [0], [1], [0, 0, 1, 1], [], []>} : vector<8x128xf32>, vector<128x32xf32>, vector<8x32xf32> -> vector<8x32xf32>
    %20 = arith.addf %3, %19 : vector<8x32xf32>
    %c0_14 = arith.constant 0 : index
    %c0_15 = arith.constant 0 : index
    %21 = vector.load %arg7[%c0_14, %c0_15] : memref<8x32xf32, #tpu.memory_space<vmem>>, vector<8x32xf32>
    tpu.vector_store %arg7[%c0_14, %c0_15], %20 {strides = array<i32>} : memref<8x32xf32, #tpu.memory_space<vmem>>, vector<8x32xf32>,
    %c0_i32_16 = arith.constant 0 : i32
    %22 = arith.cmpi eq, %arg1, %c0_i32_16 : i32
    %23 = arith.extui %22 : i1 to i32
    %c0_i32_17 = arith.constant 0 : i32
    %24 = arith.cmpi ne, %23, %c0_i32_17 : i32
    scf.if %24 {
      %c0_18 = arith.constant 0 : index
      %c0_19 = arith.constant 0 : index
      %25 = vector.load %arg7[%c0_18, %c0_19] : memref<8x32xf32, #tpu.memory_space<vmem>>, vector<8x32xf32>
      %c0_20 = arith.constant 0 : index
      %c0_21 = arith.constant 0 : index
      %26 = vector.load %arg6[%c0_20, %c0_21] : memref<1x32xf32, #tpu.memory_space<vmem>>, vector<1x32xf32>
      %27 = vector.broadcast %26 : vector<1x32xf32> to vector<8x32xf32>
      %28 = arith.addf %25, %27 : vector<8x32xf32>
      %c0_22 = arith.constant 0 : index
      %c0_23 = arith.constant 0 : index
      %29 = vector.load %arg7[%c0_22, %c0_23] : memref<8x32xf32, #tpu.memory_space<vmem>>, vector<8x32xf32>
      tpu.vector_store %arg7[%c0_22, %c0_23], %28 {strides = array<i32>} : memref<8x32xf32, #tpu.memory_space<vmem>>, vector<8x32xf32>,
    } else {
    }
    return
  }
  func.func @transform_0(%arg0: i32, %arg1: i32) -> (i32, i32) {
    %c0_i32 = arith.constant 0 : i32
    %c0_i32_0 = arith.constant 0 : i32
    return %arg0, %c0_i32 : i32, i32
  }
  func.func @transform_1(%arg0: i32, %arg1: i32) -> (i32, i32) {
    %c0_i32 = arith.constant 0 : i32
    %c0_i32_0 = arith.constant 0 : i32
    return %c0_i32, %arg1 : i32, i32
  }
  func.func @transform_2(%arg0: i32, %arg1: i32) -> (i32, i32) {
    %c0_i32 = arith.constant 0 : i32
    %c0_i32_0 = arith.constant 0 : i32
    return %c0_i32, %arg1 : i32, i32
  }
  func.func @transform_3(%arg0: i32, %arg1: i32) -> (i32, i32) {
    %c0_i32 = arith.constant 0 : i32
    %c0_i32_0 = arith.constant 0 : i32
    return %arg1, %c0_i32 : i32, i32
  }
  func.func @transform_4(%arg0: i32, %arg1: i32) -> (i32, i32) {
    %c0_i32 = arith.constant 0 : i32
    %c0_i32_0 = arith.constant 0 : i32
    %c0_i32_1 = arith.constant 0 : i32
    return %c0_i32, %c0_i32_0 : i32, i32
  }
  func.func @transform_5(%arg0: i32, %arg1: i32) -> (i32, i32) {
    %c0_i32 = arith.constant 0 : i32
    %c0_i32_0 = arith.constant 0 : i32
    return %arg0, %c0_i32 : i32, i32
  }
}

</mosaic_0001>

<llo_original>
// kernel: tpu_custom_call.1
$region0: #{tpu_custom_call.1}
  #allocation0 [shape = 'u32[]', space=smem, size = 0x4, offset = 0x4, fixed_abs, tag = 'smem constant byte address 0x4 - core index']
  #allocation1 [shape = 'u32[144,128]{1,0:T(1,128)}', space=vmem, size = 0x12000, scoped, tag = 'internal scratch']
  %s0 = inlined_call_operand.vmem [shape: f32[16,32], index: 0, kind: input, shape index: {}]
  %s1 = inlined_call_operand.vmem [shape: f32[32,128], index: 1, kind: input, shape index: {}]
  %s2 = inlined_call_operand.vmem [shape: f32[1,128], index: 2, kind: input, shape index: {}]
  %s3 = inlined_call_operand.vmem [shape: f32[128,32], index: 3, kind: input, shape index: {}]
  %s4 = inlined_call_operand.vmem [shape: f32[1,32], index: 4, kind: input, shape index: {}]
  %s5 = inlined_call_operand.hbm [shape: f32[16,32], index: 5, kind: output, shape index: {}]
  %s6 = sld [smem:[#allocation0]]
  $region61: #{tpu_custom_call.1} parent=0
    _
  %s8 = ssub.s32 1, %s6
  %s9 = scalar_select 0, %s8, %s6
  $region1: #{tpu_custom_call.1} parent=0
    #allocation2 [shape = 'u8[8192]{0}', space=vmem, size = 0x2000, scoped, tag = 'output window, operand 0']
    #allocation3 [shape = 's32[2]{0}', space=sflag, size = 0x8, scoped, tag = 'scoped memory for tpu_custom_call.1']
    %10 = vsyncpa [#allocation3], 0
    %s11 = scalar_lea.sflag [#allocation3], 1
    %12 = vsyncpa %s11, 0
    loop: start=0, step=1, limit=4
    $region2: #{tpu_custom_call.1} parent=1 // loop_pre_header
      _
    $region3: #{tpu_custom_call.1} parent=1 // loop_header
      %s14 = sphi 0, %s18
      %p15 = scmp.ge.s32.totalorder %s14, 4
      %s21 = sphi 0, %s33
      %s22 = sphi 0, %s29
      %s23 = sphi 0, %s21
      %s24 = sphi 0, %s22
      %s25 = sphi 0, %s23
      %s26 = sphi 0, %s24
      %s36 = sphi 0, %s38
      %s39 = sphi 0, %s36
      %s40 = sphi 0, %s39
      %s56 = sphi 0, %s40
      %s62 = sphi 0, %s64
      %s65 = sphi 0, %s62
      %s66 = sphi 0, %s65
      %s82 = sphi 0, %s66
      %s88 = sphi 0, %s90
      %s91 = sphi 0, %s88
      %s92 = sphi 0, %s91
      %s108 = sphi 0, %s92
      %s114 = sphi 0, %s116
      %s117 = sphi 0, %s114
      %s118 = sphi 0, %s117
      %s134 = sphi 0, %s118
      %s138 = sphi 0, %s138
      %s140 = sphi 0, %s138
      %s141 = sphi 0, %s140
      %s155 = sphi 0, %s141
      %s161 = sphi 0, %s163
      %s164 = sphi 0, %s161
      %s165 = sphi 0, %s164
      %s181 = sphi 0, %s165
    $region4: #{tpu_custom_call.1} parent=1 // loop_header_branch
      %17 = sbr.rel (%p15) target = $region8
    $region5: #{tpu_custom_call.1} parent=1 // loop_body
      %s19 = ssub.s32 %s14, 1
      %s20 = ssub.s32 %s14, 2
      %s27 = sadd.s32 1, %s22
      %p28 = scmp.ge.s32.totalorder %s27, 1
      %s29 = scalar_select %p28, 0, %s27
      %s30 = sadd.s32 1, %s21
      %s31 = scalar_select %p28, %s30, %s21
      %p32 = scmp.ge.s32.totalorder %s31, 2
      %s33 = scalar_select %p32, 0, %s31
      %s34 = ssub.s32 %s21, %s33
      %p35 = scmp.eq.s32.totalorder %s34, 0
      %s37 = sadd.s32 %s36, 1
      %s38 = scalar_select %p35, %s36, %s37
      %p41 = pneg %p35
      %p42 = scmp.eq.s32.totalorder %s14, 1
      %p43 = por %p41, %p42
      %p44 = scmp.ne.s32.totalorder %s36, %s39
      %p45 = scmp.eq.s32.totalorder %s14, 0
      %p46 = por %p44, %p45
      %p47 = scmp.ne.s32.totalorder %s36, %s39
      %p48 = scmp.eq.s32.totalorder %s19, 1
      %p49 = por %p47, %p48
      %p50 = scmp.ne.s32.totalorder %s39, %s40
      %p51 = scmp.eq.s32.totalorder %s19, 0
      %p52 = por %p50, %p51
      %p53 = scmp.ne.s32.totalorder %s39, %s40
      %p54 = scmp.eq.s32.totalorder %s20, 1
      %p55 = por %p53, %p54
      %p57 = scmp.ne.s32.totalorder %s40, %s56
      %p58 = scmp.eq.s32.totalorder %s20, 0
      %p59 = por %p57, %p58
      %s60 = ssub.s32 %s22, %s29
      %p61 = scmp.eq.s32.totalorder %s60, 0
      %s63 = sadd.s32 %s62, 1
      %s64 = scalar_select %p61, %s62, %s63
      %p67 = pneg %p61
      %p68 = scmp.eq.s32.totalorder %s14, 1
      %p69 = por %p67, %p68
      %p70 = scmp.ne.s32.totalorder %s62, %s65
      %p71 = scmp.eq.s32.totalorder %s14, 0
      %p72 = por %p70, %p71
      %p73 = scmp.ne.s32.totalorder %s62, %s65
      %p74 = scmp.eq.s32.totalorder %s19, 1
      %p75 = por %p73, %p74
      %p76 = scmp.ne.s32.totalorder %s65, %s66
      %p77 = scmp.eq.s32.totalorder %s19, 0
      %p78 = por %p76, %p77
      %p79 = scmp.ne.s32.totalorder %s65, %s66
      %p80 = scmp.eq.s32.totalorder %s20, 1
      %p81 = por %p79, %p80
      %p83 = scmp.ne.s32.totalorder %s66, %s82
      %p84 = scmp.eq.s32.totalorder %s20, 0
      %p85 = por %p83, %p84
      %s86 = ssub.s32 %s22, %s29
      %p87 = scmp.eq.s32.totalorder %s86, 0
      %s89 = sadd.s32 %s88, 1
      %s90 = scalar_select %p87, %s88, %s89
      %p93 = pneg %p87
      %p94 = scmp.eq.s32.totalorder %s14, 1
      %p95 = por %p93, %p94
      %p96 = scmp.ne.s32.totalorder %s88, %s91
      %p97 = scmp.eq.s32.totalorder %s14, 0
      %p98 = por %p96, %p97
      %p99 = scmp.ne.s32.totalorder %s88, %s91
      %p100 = scmp.eq.s32.totalorder %s19, 1
      %p101 = por %p99, %p100
      %p102 = scmp.ne.s32.totalorder %s91, %s92
      %p103 = scmp.eq.s32.totalorder %s19, 0
      %p104 = por %p102, %p103
      %p105 = scmp.ne.s32.totalorder %s91, %s92
      %p106 = scmp.eq.s32.totalorder %s20, 1
      %p107 = por %p105, %p106
      %p109 = scmp.ne.s32.totalorder %s92, %s108
      %p110 = scmp.eq.s32.totalorder %s20, 0
      %p111 = por %p109, %p110
      %s112 = ssub.s32 %s22, %s29
      %p113 = scmp.eq.s32.totalorder %s112, 0
      %s115 = sadd.s32 %s114, 1
      %s116 = scalar_select %p113, %s114, %s115
      %p119 = pneg %p113
      %p120 = scmp.eq.s32.totalorder %s14, 1
      %p121 = por %p119, %p120
      %p122 = scmp.ne.s32.totalorder %s114, %s117
      %p123 = scmp.eq.s32.totalorder %s14, 0
      %p124 = por %p122, %p123
      %p125 = scmp.ne.s32.totalorder %s114, %s117
      %p126 = scmp.eq.s32.totalorder %s19, 1
      %p127 = por %p125, %p126
      %p128 = scmp.ne.s32.totalorder %s117, %s118
      %p129 = scmp.eq.s32.totalorder %s19, 0
      %p130 = por %p128, %p129
      %p131 = scmp.ne.s32.totalorder %s117, %s118
      %p132 = scmp.eq.s32.totalorder %s20, 1
      %p133 = por %p131, %p132
      %p135 = scmp.ne.s32.totalorder %s118, %s134
      %p136 = scmp.eq.s32.totalorder %s20, 0
      %p137 = por %p135, %p136
      %s139 = sadd.s32 %s138, 1
      %p142 = scmp.eq.s32.totalorder %s14, 1
      %p143 = scmp.ne.s32.totalorder %s138, %s140
      %p144 = scmp.eq.s32.totalorder %s14, 0
      %p145 = por %p143, %p144
      %p146 = scmp.ne.s32.totalorder %s138, %s140
      %p147 = scmp.eq.s32.totalorder %s19, 1
      %p148 = por %p146, %p147
      %p149 = scmp.ne.s32.totalorder %s140, %s141
      %p150 = scmp.eq.s32.totalorder %s19, 0
      %p151 = por %p149, %p150
      %p152 = scmp.ne.s32.totalorder %s140, %s141
      %p153 = scmp.eq.s32.totalorder %s20, 1
      %p154 = por %p152, %p153
      %p156 = scmp.ne.s32.totalorder %s141, %s155
      %p157 = scmp.eq.s32.totalorder %s20, 0
      %p158 = por %p156, %p157
      %s159 = ssub.s32 %s21, %s33
      %p160 = scmp.eq.s32.totalorder %s159, 0
      %s162 = sadd.s32 %s161, 1
      %s163 = scalar_select %p160, %s161, %s162
      %p166 = pneg %p160
      %p167 = scmp.eq.s32.totalorder %s14, 1
      %p168 = por %p166, %p167
      %p169 = scmp.ne.s32.totalorder %s161, %s164
      %p170 = scmp.eq.s32.totalorder %s14, 0
      %p171 = por %p169, %p170
      %p172 = scmp.ne.s32.totalorder %s161, %s164
      %p173 = scmp.eq.s32.totalorder %s19, 1
      %p174 = por %p172, %p173
      %p175 = scmp.ne.s32.totalorder %s164, %s165
      %p176 = scmp.eq.s32.totalorder %s19, 0
      %p177 = por %p175, %p176
      %p178 = scmp.ne.s32.totalorder %s164, %s165
      %p179 = scmp.eq.s32.totalorder %s20, 1
      %p180 = por %p178, %p179
      %p182 = scmp.ne.s32.totalorder %s165, %s181
      %p183 = scmp.eq.s32.totalorder %s20, 0
      %p184 = por %p182, %p183
      %p185 = scmp.le.s32.totalorder 1, %s14
      %p186 = scmp.lt.s32.totalorder %s14, 3
      %p187 = pnand %p185, %p186
      %p188 = pneg %p187
      // Predicated region
      $region9: #{tpu_custom_call.1} parent=5 // pred_check
        _
      $region10: #{tpu_custom_call.1} parent=5 // pred_check_branch
        %190 = sbr.rel (%p187) target = $region12
      $region11: #{tpu_custom_call.1} parent=5 // pred_region
        %s191 = ssub.s32 %s14, 1
        // Predicated region
        $region13: #{tpu_custom_call.1} parent=11 // pred_check
          %p192 = pneg %p78
        $region14: #{tpu_custom_call.1} parent=11 // pred_check_branch
          %194 = sbr.rel (%p192) target = $region16
        $region15: #{tpu_custom_call.1} parent=11 // pred_region
          %p195 = scmp.lt.s32.totalorder %s24, 0
          %s196 = scalar_select %p195, %s24, 0
          %s197 = smul.addr %s196, 8
          %s198 = scalar_lea.vmem %s1, %s197
        $region16: #{tpu_custom_call.1} parent=11 // pred_fallthru
          _
        // Predicated region
        $region17: #{tpu_custom_call.1} parent=11 // pred_check
          %p199 = pneg %p104
        $region18: #{tpu_custom_call.1} parent=11 // pred_check_branch
          %201 = sbr.rel (%p199) target = $region20
        $region19: #{tpu_custom_call.1} parent=11 // pred_region
          %p202 = scmp.lt.s32.totalorder %s24, 0
          %s203 = scalar_select %p202, %s24, 0
          %s204 = scalar_lea.vmem %s2, %s203
        $region20: #{tpu_custom_call.1} parent=11 // pred_fallthru
          _
        // Predicated region
        $region21: #{tpu_custom_call.1} parent=11 // pred_check
          %p205 = pneg %p130
        $region22: #{tpu_custom_call.1} parent=11 // pred_check_branch
          %207 = sbr.rel (%p205) target = $region24
        $region23: #{tpu_custom_call.1} parent=11 // pred_region
          %s208 = smul.u32 16, %s24
          %p209 = scmp.lt.s32.totalorder %s208, 15
          %s210 = scalar_select %p209, %s208, 15
          %s211 = smul.addr %s210, 8
          %s212 = scalar_lea.vmem %s3, %s211
          %s213 = smul.u32 16, %s24
        $region24: #{tpu_custom_call.1} parent=11 // pred_fallthru
          _
        // Predicated region
        $region25: #{tpu_custom_call.1} parent=11 // pred_check
          %p214 = pneg %p151
        $region26: #{tpu_custom_call.1} parent=11 // pred_check_branch
          %216 = sbr.rel (%p214) target = $region28
        $region27: #{tpu_custom_call.1} parent=11 // pred_region
          _
        $region28: #{tpu_custom_call.1} parent=11 // pred_fallthru
          _
      $region12: #{tpu_custom_call.1} parent=5 // pred_fallthru
        _
      %p217 = scmp.lt.s32.totalorder %s14, 2
      // Predicated region
      $region29: #{tpu_custom_call.1} parent=5 // pred_check
        %p218 = pneg %p217
      $region30: #{tpu_custom_call.1} parent=5 // pred_check_branch
        %220 = sbr.rel (%p218) target = $region32
      $region31: #{tpu_custom_call.1} parent=5 // pred_region
        // Predicated region
        $region33: #{tpu_custom_call.1} parent=31 // pred_check
          %p221 = pneg %p46
        $region34: #{tpu_custom_call.1} parent=31 // pred_check_branch
          %223 = sbr.rel (%p221) target = $region36
        $region35: #{tpu_custom_call.1} parent=31 // pred_region
          %p224 = scmp.lt.s32.totalorder %s21, 1
          %s225 = scalar_select %p224, %s21, 1
          %s226 = smul.addr %s225, 8
          %s227 = scalar_lea.vmem %s0, %s226
        $region36: #{tpu_custom_call.1} parent=31 // pred_fallthru
          _
      $region32: #{tpu_custom_call.1} parent=5 // pred_fallthru
        _
      %p228 = scmp.le.s32.totalorder 1, %s14
      %p229 = scmp.lt.s32.totalorder %s14, 3
      %p230 = pnand %p228, %p229
      %p231 = pneg %p230
      // Predicated region
      $region37: #{tpu_custom_call.1} parent=5 // pred_check
        _
      $region38: #{tpu_custom_call.1} parent=5 // pred_check_branch
        %233 = sbr.rel (%p230) target = $region40
      $region39: #{tpu_custom_call.1} parent=5 // pred_region
        %s234 = ssub.s32 %s14, 1
        %p235 = scmp.lt.s32.totalorder %s23, 1
        %s236 = scalar_select %p235, %s23, 1
        %s237 = smul.addr %s236, 8
        %s238 = scalar_lea.vmem %s0, %s237
        %p239 = pneg %p52
        %p240 = pneg %p49
        %p241 = scmp.lt.s32.totalorder %s24, 0
        %s242 = scalar_select %p241, %s24, 0
        %s243 = smul.addr %s242, 8
        %s244 = scalar_lea.vmem %s1, %s243
        %p245 = pneg %p78
        %p246 = pneg %p75
        %p247 = scmp.lt.s32.totalorder %s24, 0
        %s248 = scalar_select %p247, %s24, 0
        %s249 = scalar_lea.vmem %s2, %s248
        %p250 = pneg %p104
        %p251 = pneg %p101
        %s252 = smul.u32 16, %s24
        %p253 = scmp.lt.s32.totalorder %s252, 15
        %s254 = scalar_select %p253, %s252, 15
        %s255 = smul.addr %s254, 8
        %s256 = scalar_lea.vmem %s3, %s255
        %p257 = pneg %p130
        %p258 = pneg %p127
        %p259 = pneg %p151
        %p260 = pneg %p148
        %p261 = pneg %p177
        %p262 = pneg %p174
        %s263 = sand.u32 %s164, 1
        %s264 = scalar_lea.sflag [#allocation3], %s263
        %s265 = sand.u32 %s164, 1
        %s266 = smul.addr %s265, 8
        %s267 = scalar_lea.vmem [#allocation2], %s266
        %p268 = scmp.lt.s32.totalorder %s23, 1
        %s269 = scalar_select %p268, %s23, 1
        %s270 = smul.addr %s269, 8
        %s271 = scalar_lea.vmem %s0, %s270
        %p272 = scmp.lt.s32.totalorder %s24, 0
        %s273 = scalar_select %p272, %s24, 0
        %s274 = smul.addr %s273, 8
        %s275 = scalar_lea.vmem %s1, %s274
        %p276 = scmp.lt.s32.totalorder %s24, 0
        %s277 = scalar_select %p276, %s24, 0
        %s278 = scalar_lea.vmem %s2, %s277
        %s279 = smul.u32 16, %s24
        %p280 = scmp.lt.s32.totalorder %s279, 15
        %s281 = scalar_select %p280, %s279, 15
        %s282 = smul.addr %s281, 8
        %s283 = scalar_lea.vmem %s3, %s282
        %s284 = smul.u32 16, %s24
        %p285 = scmp.eq.s32.totalorder %s24, 0
        // Predicated region
        $region41: #{tpu_custom_call.1} parent=39 // pred_check
          %p286 = pneg %p285
        $region42: #{tpu_custom_call.1} parent=39 // pred_check_branch
          %288 = sbr.rel (%p286) target = $region44
        $region43: #{tpu_custom_call.1} parent=39 // pred_region
          %vm289 = vcmask 261120
          %290 = vst.msk [vmem:[%s267] sm:$0xff] %vm289, 0.0
        $region44: #{tpu_custom_call.1} parent=39 // pred_fallthru
          _
        %v291 = vld [vmem:[%s267] sm:$0xff]
        %v292 = vld [vmem:[%s271] sm:$0xff]
        %v293 = vld [vmem:[%s275] sm:$0xff]
        %v294 = vld [vmem:[%s275 + $0x8] sm:$0xff]
        %v295 = vld [vmem:[%s275 + $0x10] sm:$0xff]
        %v296 = vld [vmem:[%s275 + $0x18] sm:$0xff]
        %v297 = vld [vmem:[%s278] sm:$0x1]
        %v299 = vlaneseq
        %v300 = vshrl.u32 %v299, 7
        %v301 = vsub.s32 0, %v300
        %v302 = vrot.slane %v297, %v301
        %vm304 = vcmask 261120
        %v306 = vsel %vm304, %v292, 0
        %308 = vmatprep.subr.mxu0 0.0
        %309 = vmatpush1.msra.mxu0 0.0
        %310 = vmatprep.subr.mxu0 0.0
        %311 = vmatpush1.msra.mxu0 0.0
        %312 = vmatprep.subr.mxu0 0.0
        %313 = vmatpush1.msra.mxu0 0.0
        %314 = vmatprep.subr.mxu0 0.0
        %315 = vmatpush1.msra.mxu0 0.0
        %316 = vmatprep.subr.mxu0 0.0
        %317 = vmatpush1.msra.mxu0 0.0
        %318 = vmatprep.subr.mxu0 0.0
        %319 = vmatpush1.msra.mxu0 0.0
        %320 = vmatprep.subr.mxu0 0.0
        %321 = vmatpush1.msra.mxu0 0.0
        %322 = vmatprep.subr.mxu0 0.0
        %323 = vmatpush1.msra.mxu0 0.0
        %324 = vmatprep.subr.mxu0 0.0
        %325 = vmatpush1.msra.mxu0 0.0
        %326 = vmatprep.subr.mxu0 0.0
        %327 = vmatpush1.msra.mxu0 0.0
        %328 = vmatprep.subr.mxu0 0.0
        %329 = vmatpush1.msra.mxu0 0.0
        %330 = vmatprep.subr.mxu0 0.0
        %331 = vmatpush1.msra.mxu0 0.0
        %332 = vmatprep.subr.mxu0 0.0
        %333 = vmatpush1.msra.mxu0 %v296
        %334 = vmatprep.subr.mxu0 0.0
        %335 = vmatpush1.msra.mxu0 %v295
        %336 = vmatprep.subr.mxu0 0.0
        %337 = vmatpush1.msra.mxu0 %v294
        %338 = vmatprep.subr.mxu0 0.0
        %339 = vmatpush1.msra.mxu0 %v293
        %340 = vmatprep.subr.mxu0 0.0
        %341 = vmatpush2.msra.mxu0 0.0
        %342 = vmatprep.subr.mxu0 0.0
        %343 = vmatpush2.msra.mxu0 0.0
        %344 = vmatprep.subr.mxu0 0.0
        %345 = vmatpush2.msra.mxu0 0.0
        %346 = vmatprep.subr.mxu0 0.0
        %347 = vmatpush2.msra.mxu0 0.0
        %348 = vmatprep.subr.mxu0 0.0
        %349 = vmatpush2.msra.mxu0 0.0
        %350 = vmatprep.subr.mxu0 0.0
        %351 = vmatpush2.msra.mxu0 0.0
        %352 = vmatprep.subr.mxu0 0.0
        %353 = vmatpush2.msra.mxu0 0.0
        %354 = vmatprep.subr.mxu0 0.0
        %355 = vmatpush2.msra.mxu0 0.0
        %356 = vmatprep.subr.mxu0 0.0
        %357 = vmatpush2.msra.mxu0 0.0
        %358 = vmatprep.subr.mxu0 0.0
        %359 = vmatpush2.msra.mxu0 0.0
        %360 = vmatprep.subr.mxu0 0.0
        %361 = vmatpush2.msra.mxu0 0.0
        %362 = vmatprep.subr.mxu0 0.0
        %363 = vmatpush2.msra.mxu0 0.0
        %364 = vmatprep.subr.mxu0 0.0
        %365 = vmatpush2.msra.mxu0 0.0
        %366 = vmatprep.subr.mxu0 0.0
        %367 = vmatpush2.msra.mxu0 0.0
        %368 = vmatprep.subr.mxu0 0.0
        %369 = vmatpush2.msra.mxu0 0.0
        %370 = vmatprep.subr.mxu0 0.0
        %371 = vmatpush2.msra.mxu0 0.0
        %372 = vmatprep.mubr.f32.mxu0 0.0
        %373 = vmatmul.mubr.f32.gmra.mxu0 %v306
        %v374 = vpop.f32.mrf.mxu0
        %v375 = vadd.f32 %v302, %v374
        %v376 = vpop.f32.mrf.mxu0
        %377 = vdwg.mxu0
        %v378 = vmul.f32 %v375, 0.5
        %v379 = vmul.f32 %v375, 0.70710677
        %v380 = verf.f32.pop %v379
        %v381 = vadd.f32 %v380, 1.0
        %v382 = vmul.f32 %v378, %v381
        %v383 = vld [vmem:[%s283] sm:$0xff]
        %v384 = vld [vmem:[%s283 + $0x8] sm:$0xff]
        %v385 = vld [vmem:[%s283 + $0x10] sm:$0xff]
        %v386 = vld [vmem:[%s283 + $0x18] sm:$0xff]
        %v387 = vld [vmem:[%s283 + $0x20] sm:$0xff]
        %v388 = vld [vmem:[%s283 + $0x28] sm:$0xff]
        %v389 = vld [vmem:[%s283 + $0x30] sm:$0xff]
        %v390 = vld [vmem:[%s283 + $0x38] sm:$0xff]
        %v391 = vld [vmem:[%s283 + $0x40] sm:$0xff]
        %v392 = vld [vmem:[%s283 + $0x48] sm:$0xff]
        %v393 = vld [vmem:[%s283 + $0x50] sm:$0xff]
        %v394 = vld [vmem:[%s283 + $0x58] sm:$0xff]
        %v395 = vld [vmem:[%s283 + $0x60] sm:$0xff]
        %v396 = vld [vmem:[%s283 + $0x68] sm:$0xff]
        %v397 = vld [vmem:[%s283 + $0x70] sm:$0xff]
        %v398 = vld [vmem:[%s283 + $0x78] sm:$0xff]
        %399 = vmatprep.subr.mxu0 0.0
        %400 = vmatpush1.msra.mxu0 %v398
        %401 = vmatprep.subr.mxu0 0.0
        %402 = vmatpush1.msra.mxu0 %v397
        %403 = vmatprep.subr.mxu0 0.0
        %404 = vmatpush1.msra.mxu0 %v396
        %405 = vmatprep.subr.mxu0 0.0
        %406 = vmatpush1.msra.mxu0 %v395
        %407 = vmatprep.subr.mxu0 0.0
        %408 = vmatpush1.msra.mxu0 %v394
        %409 = vmatprep.subr.mxu0 0.0
        %410 = vmatpush1.msra.mxu0 %v393
        %411 = vmatprep.subr.mxu0 0.0
        %412 = vmatpush1.msra.mxu0 %v392
        %413 = vmatprep.subr.mxu0 0.0
        %414 = vmatpush1.msra.mxu0 %v391
        %415 = vmatprep.subr.mxu0 0.0
        %416 = vmatpush1.msra.mxu0 %v390
        %417 = vmatprep.subr.mxu0 0.0
        %418 = vmatpush1.msra.mxu0 %v389
        %419 = vmatprep.subr.mxu0 0.0
        %420 = vmatpush1.msra.mxu0 %v388
        %421 = vmatprep.subr.mxu0 0.0
        %422 = vmatpush1.msra.mxu0 %v387
        %423 = vmatprep.subr.mxu0 0.0
        %424 = vmatpush1.msra.mxu0 %v386
        %425 = vmatprep.subr.mxu0 0.0
        %426 = vmatpush1.msra.mxu0 %v385
        %427 = vmatprep.subr.mxu0 0.0
        %428 = vmatpush1.msra.mxu0 %v384
        %429 = vmatprep.subr.mxu0 0.0
        %430 = vmatpush1.msra.mxu0 %v383
        %431 = vmatprep.subr.mxu0 0.0
        %432 = vmatpush2.msra.mxu0 0.0
        %433 = vmatprep.subr.mxu0 0.0
        %434 = vmatpush2.msra.mxu0 0.0
        %435 = vmatprep.subr.mxu0 0.0
        %436 = vmatpush2.msra.mxu0 0.0
        %437 = vmatprep.subr.mxu0 0.0
        %438 = vmatpush2.msra.mxu0 0.0
        %439 = vmatprep.subr.mxu0 0.0
        %440 = vmatpush2.msra.mxu0 0.0
        %441 = vmatprep.subr.mxu0 0.0
        %442 = vmatpush2.msra.mxu0 0.0
        %443 = vmatprep.subr.mxu0 0.0
        %444 = vmatpush2.msra.mxu0 0.0
        %445 = vmatprep.subr.mxu0 0.0
        %446 = vmatpush2.msra.mxu0 0.0
        %447 = vmatprep.subr.mxu0 0.0
        %448 = vmatpush2.msra.mxu0 0.0
        %449 = vmatprep.subr.mxu0 0.0
        %450 = vmatpush2.msra.mxu0 0.0
        %451 = vmatprep.subr.mxu0 0.0
        %452 = vmatpush2.msra.mxu0 0.0
        %453 = vmatprep.subr.mxu0 0.0
        %454 = vmatpush2.msra.mxu0 0.0
        %455 = vmatprep.subr.mxu0 0.0
        %456 = vmatpush2.msra.mxu0 0.0
        %457 = vmatprep.subr.mxu0 0.0
        %458 = vmatpush2.msra.mxu0 0.0
        %459 = vmatprep.subr.mxu0 0.0
        %460 = vmatpush2.msra.mxu0 0.0
        %461 = vmatprep.subr.mxu0 0.0
        %462 = vmatpush2.msra.mxu0 0.0
        %463 = vmatprep.mubr.f32.mxu0 0.0
        %464 = vmatmul.mubr.f32.gmra.mxu0 %v382
        %v465 = vpop.f32.mrf.mxu0
        %v466 = vadd.f32 0.0, %v465
        %v467 = vpop.f32.mrf.mxu0
        %468 = vdwg.mxu0
        %v469 = vadd.f32 %v291, %v466
        %470 = vst.msk [vmem:[%s267] sm:$0xff] %vm304, %v469
        // Predicated region
        $region45: #{tpu_custom_call.1} parent=39 // pred_check
          %p471 = pneg %p285
        $region46: #{tpu_custom_call.1} parent=39 // pred_check_branch
          %473 = sbr.rel (%p471) target = $region48
        $region47: #{tpu_custom_call.1} parent=39 // pred_region
          %v474 = vld [vmem:[%s267] sm:$0xff]
          %v475 = vld [vmem:[%s4] sm:$0x1]
          %v477 = vlaneseq
          %v478 = vshrl.u32 %v477, 7
          %v479 = vsub.s32 0, %v478
          %v480 = vrot.slane %v475, %v479
          %v482 = vadd.f32 %v474, %v480
          %483 = vst.msk [vmem:[%s267] sm:$0xff] %vm304, %v482
        $region48: #{tpu_custom_call.1} parent=39 // pred_fallthru
          _
        %s484 = sand.u32 %s164, 1
        %s485 = scalar_lea.sflag [#allocation3], %s484
        %s486 = sand.u32 %s164, 1
        %s487 = smul.addr %s486, 8
        %s488 = scalar_lea.vmem [#allocation2], %s487
        // Predicated region
        $region49: #{tpu_custom_call.1} parent=39 // pred_check
          %p489 = pneg %p174
        $region50: #{tpu_custom_call.1} parent=39 // pred_check_branch
          %491 = sbr.rel (%p489) target = $region52
        $region51: #{tpu_custom_call.1} parent=39 // pred_region
          %s493 = ssub.s32 128, 128
          %494 = vsyncadd %s485, %s493
          %s495 = smul.addr %s23, 128
          %s496 = scalar_lea.hbm %s5, %s495
          %s498 = sshll.u32 %s488, 4
          %s499 = int_to_ptr.vmem [resolvable:$true] %s498
          %501 = dma.vmem_to_hbm [thread:$0]  %s499, 128, %s496, %s485
        $region52: #{tpu_custom_call.1} parent=39 // pred_fallthru
          _
      $region40: #{tpu_custom_call.1} parent=5 // pred_fallthru
        _
      %p502 = scmp.le.s32.totalorder 2, %s14
      // Predicated region
      $region53: #{tpu_custom_call.1} parent=5 // pred_check
        %p503 = pneg %p502
      $region54: #{tpu_custom_call.1} parent=5 // pred_check_branch
        %505 = sbr.rel (%p503) target = $region56
      $region55: #{tpu_custom_call.1} parent=5 // pred_region
        %s506 = ssub.s32 %s14, 2
        // Predicated region
        $region57: #{tpu_custom_call.1} parent=55 // pred_check
          %p507 = pneg %p180
        $region58: #{tpu_custom_call.1} parent=55 // pred_check_branch
          %509 = sbr.rel (%p507) target = $region60
        $region59: #{tpu_custom_call.1} parent=55 // pred_region
          %s510 = sand.u32 %s165, 1
          %s511 = scalar_lea.sflag [#allocation3], %s510
          %s512 = sand.u32 %s165, 1
          %s513 = smul.addr %s512, 8
          %s514 = scalar_lea.vmem [#allocation2], %s513
          %515 = dma.done %s511, 128
        $region60: #{tpu_custom_call.1} parent=55 // pred_fallthru
          _
      $region56: #{tpu_custom_call.1} parent=5 // pred_fallthru
        _
    $region6: #{tpu_custom_call.1} parent=1 // loop_footer
      %s18 = sadd.s32 1, %s14
    $region7: #{tpu_custom_call.1} parent=1 // loop_footer_branch
      %13 = sbr.rel target = $region3
    $region8: #{tpu_custom_call.1} parent=1 // loop_exit
      _
    %516 = vsyncpa [#allocation3], 1
    %s517 = scalar_lea.sflag [#allocation3], 1
    %518 = vsyncpa %s517, 1

</llo_original>
